<compile_context>
chip_gen: v6e
topology: v6e:2x2x1
jax: 0.10.0
libtpu: 0.0.40
codegen_flags: <defaults>
</compile_context>

<pallas_src>
import functools

import jax
import jax.numpy as jnp
from jax.experimental import pallas as pl
from jax.experimental.pallas import tpu as pltpu

IN_CH = 4
OUT_CH = 8
RATES = (6, 12, 18)
N, H, W = 2, 16, 16
PAD = max(RATES)  # spatial zero padding applied in the wrapper (max dilation)


def _aspp_kernel(xs_ref, wbig_ref, wp_ref, bp_ref, wfm_ref, wfp_ref, o_ref, *,
                 cin, cout, hw, nb):
    """`nb` images folded into the lane axis per grid step; all refs are 2-D."""
    xs = xs_ref[...]                                                     # (113, nb*hw) bf16

    # --- branches 0..3 (1x1 conv + three dilated 3x3 convs, BN folded):
    # ONE fat bf16 matmul against a block-diagonal weight; the per-branch bias
    # lives in the extra K column (fed by the ones row of the slab).
    branches = jnp.maximum(
        jnp.dot(wbig_ref[...], xs, preferred_element_type=jnp.float32), 0.0)  # (4*cout, nb*hw)

    # --- concat(branches 0..3) + final 1x1 conv restricted to those branches ==
    # one (cout, 4*cout) @ (4*cout, nb*hw) matmul (bf16 operands, f32 accumulation).
    main = jnp.dot(wfm_ref[...], branches.astype(jnp.bfloat16),
                   preferred_element_type=jnp.float32)                   # (cout, nb*hw)

    # --- branch 4 (ASPPPooling) folded into a rank-1, per-image bias on the final
    # projection.  The bilinear upsample of a 1x1 map (align_corners=False) is a pure
    # broadcast, so: mean -> pooled = relu(wp@mean + bp) -> fbias = wf_pool @ pooled,
    # then a lane-broadcast add.  Mean comes from the slab's center taps (rows 0..cin-1),
    # cast to f32 before the 256-element reduction.  nb is a Python constant, so the
    # per-image slices below are static lane slices at multiples of 128.
    xc = xs[:cin, :].astype(jnp.float32)                                 # (cin, nb*hw)
    mean_cols = [jnp.mean(xc[:, i * hw:(i + 1) * hw], axis=1, keepdims=True)
                 for i in range(nb)]                                     # nb x (cin, 1)
    means = mean_cols[0] if nb == 1 else jnp.concatenate(mean_cols, axis=1)   # (cin, nb)
    pooled = jnp.maximum(
        jnp.dot(wp_ref[...], means, preferred_element_type=jnp.float32)
        + bp_ref[...], 0.0)                                              # (cout, nb)
    fbias = jnp.dot(wfp_ref[...], pooled, preferred_element_type=jnp.float32)  # (cout, nb)
    bias_cols = [jnp.broadcast_to(fbias[:, i:i + 1], (cout, hw)) for i in range(nb)]
    bias_full = bias_cols[0] if nb == 1 else jnp.concatenate(bias_cols, axis=1)  # (cout, nb*hw)

    # Lane-dense store (nb*hw = 256 or 512 lanes), directly in NCHW channel-major form.
    o_ref[...] = (main + bias_full).astype(o_ref.dtype)


def _pack_params(params, cin, cout):
    """Fold the conv-branch weights (+ biases) into one block-diagonal, channels-major
    matrix with a trailing bias column; split the final 1x1 conv into the part acting
    on the 4 conv branches and the part acting on the pooled branch (rank-1 path)."""
    nr = len(RATES)
    kcols = cin * (1 + 9 * nr)                                           # 4 + 108 = 112
    wbig = jnp.zeros(((1 + nr) * cout, kcols + 1), jnp.float32)          # +1 bias column
    wbig = wbig.at[0:cout, 0:cin].set(params['w0'].T)                    # 1x1 branch
    for r in range(nr):
        blk = params['wd'][r].reshape(9 * cin, cout).T                   # (cout, 9*cin)
        c0 = cin + r * 9 * cin
        wbig = wbig.at[(r + 1) * cout:(r + 2) * cout, c0:c0 + 9 * cin].set(blk)
    bbig = jnp.concatenate([params['b0'].T]
                           + [params['bd'][r].T for r in range(nr)], axis=0)  # (4*cout, 1)
    wbig = wbig.at[:, kcols:kcols + 1].set(bbig)                         # bias baked into K

    wf = params['wf']                                                    # (5*cout, cout)
    wfm = wf[:4 * cout].T                                                # (cout, 4*cout)
    wfp = wf[4 * cout:].T                                                # (cout, cout)

    # bf16 operands for the two full-width matmuls (f32 accumulation in-kernel);
    # the tiny rank-1 pooling path stays f32.
    return (wbig.astype(jnp.bfloat16), params['wp'].T, params['bp'].T,
            wfm.astype(jnp.bfloat16), wfp)


def _build_slab(x, cin, h, w):
    """im2col slab in the wrapper (layout plumbing, not compute): center taps, the 9
    shifted zero-padded views per dilation rate, plus a ones row that feeds the baked-in
    bias column.  Kept as explicit static slices so XLA can fuse them into copy fusions.
    """
    n = x.shape[0]
    hw = h * w
    xp = jnp.pad(x, ((0, 0), (0, 0), (PAD, PAD), (PAD, PAD)))
    views = [x.reshape(n, cin, hw)]                                      # center taps (branch 0)
    for rate in RATES:
        for ky in range(3):
            for kx in range(3):
                dy, dx = (ky - 1) * rate, (kx - 1) * rate
                v = jax.lax.slice(xp, (0, 0, PAD + dy, PAD + dx),
                                  (n, cin, PAD + dy + h, PAD + dx + w))
                views.append(v.reshape(n, cin, hw))
    ones = jnp.ones((n, 1, hw), x.dtype)                                 # bias row
    return jnp.concatenate(views + [ones], axis=1)                       # (n, 113, hw)


def _images_per_step(n):
    """grid strategy: single-TC v5e/v6e -> fold the whole batch into lanes (1 step);
    2-TC v7x (and default/unknown) -> one image per step, sharded across cores."""
    try:
        kind = jax.devices()[0].device_kind.lower()
    except Exception:
        return 1
    if ("v5" in kind) or ("v6" in kind):
        return n if n > 0 else 1
    return 1


@functools.partial(jax.jit, static_argnames=("nb",))
def _aspp_forward_impl(x_nchw, params, *, nb):
    x = x_nchw.astype(jnp.float32)                                       # already channels-major
    n, cin, h, w = x.shape
    cout = params['w0'].shape[-1]
    hw = h * w
    steps = n // nb

    slab = _build_slab(x, cin, h, w).astype(jnp.bfloat16)                # (n, 113, hw)
    ktot1 = slab.shape[1]
    # Fold nb images per grid step into the lane axis: lanes [i*hw, (i+1)*hw) = image i.
    slab = (slab.reshape(steps, nb, ktot1, hw)
                .transpose(0, 2, 1, 3)
                .reshape(steps, ktot1, nb * hw))

    wbig, wpt, bpt, wfm, wfp = _pack_params(params, cin, cout)

    def rep(arr):  # whole (tiny) weight resident every grid step
        nd = arr.ndim
        return pl.BlockSpec(arr.shape, lambda i, _nd=nd: (0,) * _nd)

    kernel = functools.partial(_aspp_kernel, cin=cin, cout=cout, hw=hw, nb=nb)

    # VMEM footprint is ~hundreds of KB double-buffered -> no vmem_limit / Buffered tuning.
    out = pl.pallas_call(
        kernel,
        out_shape=jax.ShapeDtypeStruct((steps, cout, nb * hw), jnp.float32),
        grid_spec=pltpu.PrefetchScalarGridSpec(
            num_scalar_prefetch=0,
            grid=(steps,),
            in_specs=[
                pl.BlockSpec((pl.Squeezed(), ktot1, nb * hw), lambda i: (i, 0, 0)),
                rep(wbig), rep(wpt), rep(bpt), rep(wfm), rep(wfp),
            ],
            out_specs=pl.BlockSpec((pl.Squeezed(), cout, nb * hw), lambda i: (i, 0, 0)),
        ),
        compiler_params=pltpu.CompilerParams(dimension_semantics=("parallel",)),
    )(slab, wbig, wpt, bpt, wfm, wfp)

    # Unfold the lane-packed batch back to NCHW.
    out = (out.reshape(steps, cout, nb, hw)
              .transpose(0, 2, 1, 3)
              .reshape(n, cout, h, w))
    return out


def aspp_forward(x_nchw, params):
    """x_nchw: (N, Cin, H, W) float32 -> (N, Cout, H, W) float32."""
    n = x_nchw.shape[0]
    nb = _images_per_step(n)
    if n % nb != 0:
        nb = 1
    return _aspp_forward_impl(x_nchw, params, nb=nb)


def init_params(key):
    """Deterministic synthetic parameters; BatchNorm(eval) folded into conv weight/bias."""
    cin, cout = IN_CH, OUT_CH
    keys = iter(jax.random.split(key, 32))

    def bn_fold():
        g = 1.0 + 0.1 * jax.random.normal(next(keys), (cout,), jnp.float32)
        b = 0.1 * jax.random.normal(next(keys), (cout,), jnp.float32)
        m = 0.1 * jax.random.normal(next(keys), (cout,), jnp.float32)
        v = 1.0 + 0.1 * jnp.abs(jax.random.normal(next(keys), (cout,), jnp.float32))
        s = g / jnp.sqrt(v + 1e-5)
        return s, b - m * s

    # Conv2d1x1Block
    w0 = 0.1 * jax.random.normal(next(keys), (cin, cout), jnp.float32)
    s, t = bn_fold()
    w0, b0 = w0 * s, t.reshape(1, cout)

    # Conv2dBlock (3x3, dilated) per rate, weights in HWIO
    wd, bd = [], []
    for _ in RATES:
        wr = 0.1 * jax.random.normal(next(keys), (3, 3, cin, cout), jnp.float32)
        s, t = bn_fold()
        wd.append(wr * s)
        bd.append(t.reshape(1, cout))
    wd, bd = jnp.stack(wd), jnp.stack(bd)

    # ASPPPooling's Conv2d1x1Block
    wp = 0.1 * jax.random.normal(next(keys), (cin, cout), jnp.float32)
    s, t = bn_fold()
    wp, bp = wp * s, t.reshape(1, cout)

    # final Conv2d1x1 (plain conv, bias=False per cvm convention)
    wf = 0.1 * jax.random.normal(next(keys), (5 * cout, cout), jnp.float32)

    return dict(w0=w0, b0=b0, wd=wd, bd=bd, wp=wp, bp=bp, wf=wf)


def reference_aspp(x_nchw, p):
    """Pure-JAX reference (lax conv) mirroring the PyTorch module, for a sanity check."""
    x = jnp.transpose(x_nchw, (0, 2, 3, 1)).astype(jnp.float32)
    hi = jax.lax.Precision.HIGHEST

    def conv(inp, w_hwio, b, dil, pad):
        y = jax.lax.conv_general_dilated(
            inp, w_hwio, (1, 1), [(pad, pad), (pad, pad)],
            rhs_dilation=(dil, dil),
            dimension_numbers=('NHWC', 'HWIO', 'NHWC'), precision=hi)
        return y + b

    branches = [jax.nn.relu(conv(x, p['w0'][None, None], p['b0'], 1, 0))]
    for r, rate in enumerate(RATES):
        branches.append(jax.nn.relu(conv(x, p['wd'][r], p['bd'][r], rate, rate)))
    pooled = jnp.mean(x, axis=(1, 2), keepdims=True)
    pooled = jax.nn.relu(conv(pooled, p['wp'][None, None], p['bp'], 1, 0))
    branches.append(jnp.broadcast_to(pooled, x.shape[:3] + (OUT_CH,)))
    cat = jnp.concatenate(branches, axis=-1)
    out = jnp.einsum('nhwc,cd->nhwd', cat, p['wf'], precision=hi)
    return jnp.transpose(out, (0, 3, 1, 2))


if __name__ == "__main__":
    key = jax.random.PRNGKey(0)
    kx, kp = jax.random.split(key)
    x = jax.random.normal(kx, (N, IN_CH, H, W), jnp.float32)
    params = init_params(kp)

    out = jax.block_until_ready(aspp_forward(x, params))
    assert out.shape == (N, OUT_CH, H, W), out.shape

    ref = reference_aspp(x, params)
    max_err = float(jnp.max(jnp.abs(out - ref)))
    if not max_err < 2e-2:
        raise AssertionError(f"Pallas ASPP mismatch vs reference: max abs err {max_err}")

    print("KERNEL_OK")
</pallas_src>

<mosaic_0001>
module attributes {stable_mosaic.version = 11 : i64} {
  func.func @_aspp_kernel(%arg0: i32, %arg1: memref<1x113x256xbf16, #tpu.memory_space<vmem>>, %arg2: memref<32x113xbf16, #tpu.memory_space<vmem>>, %arg3: memref<8x4xf32, #tpu.memory_space<vmem>>, %arg4: memref<8x1xf32, #tpu.memory_space<vmem>>, %arg5: memref<8x32xbf16, #tpu.memory_space<vmem>>, %arg6: memref<8x8xf32, #tpu.memory_space<vmem>>, %arg7: memref<1x8x256xf32, #tpu.memory_space<vmem>>) attributes {dimension_semantics = [#tpu.dimension_semantics<parallel>], iteration_bounds = array<i64: 2>, scalar_prefetch = 0 : i64, scratch_operands = 0 : i64, tpu.core_type = #tpu.core_type<tc>, window_params = [{transform_indices = @transform_0, window_bounds = array<i64: 1, 113, 256>}, {pipeline_mode = #tpu.pipeline_mode<synchronous>, transform_indices = @transform_1, window_bounds = array<i64: 32, 113>}, {pipeline_mode = #tpu.pipeline_mode<synchronous>, transform_indices = @transform_2, window_bounds = array<i64: 8, 4>}, {pipeline_mode = #tpu.pipeline_mode<synchronous>, transform_indices = @transform_3, window_bounds = array<i64: 8, 1>}, {pipeline_mode = #tpu.pipeline_mode<synchronous>, transform_indices = @transform_4, window_bounds = array<i64: 8, 32>}, {pipeline_mode = #tpu.pipeline_mode<synchronous>, transform_indices = @transform_5, window_bounds = array<i64: 8, 8>}, {transform_indices = @transform_6, window_bounds = array<i64: 1, 8, 256>}]} {
    %c0 = arith.constant 0 : index
    %c0_0 = arith.constant 0 : index
    %c0_1 = arith.constant 0 : index
    %0 = vector.load %arg1[%c0, %c0_0, %c0_1] : memref<1x113x256xbf16, #tpu.memory_space<vmem>>, vector<1x113x256xbf16>
    %1 = vector.shape_cast %0 : vector<1x113x256xbf16> to vector<113x256xbf16>
    %c0_2 = arith.constant 0 : index
    %c0_3 = arith.constant 0 : index
    %2 = vector.load %arg2[%c0_2, %c0_3] : memref<32x113xbf16, #tpu.memory_space<vmem>>, vector<32x113xbf16>
    %cst = arith.constant dense<0.000000e+00> : vector<32x256xf32>
    %3 = tpu.matmul %2, %1, %cst {dimension_numbers = #tpu.dot_dimension_numbers<[1], [0], [0], [1], [0, 0, 1, 1], [], []>} : vector<32x113xbf16>, vector<113x256xbf16>, vector<32x256xf32> -> vector<32x256xf32>
    %cst_4 = arith.constant 0.000000e+00 : f32
    %4 = vector.broadcast %cst_4 : f32 to vector<32x256xf32>
    %5 = arith.maximumf %3, %4 : vector<32x256xf32>
    %c0_5 = arith.constant 0 : index
    %c0_6 = arith.constant 0 : index
    %6 = vector.load %arg5[%c0_5, %c0_6] : memref<8x32xbf16, #tpu.memory_space<vmem>>, vector<8x32xbf16>
    %7 = arith.truncf %5 : vector<32x256xf32> to vector<32x256xbf16>
    %cst_7 = arith.constant dense<0.000000e+00> : vector<8x256xf32>
    %8 = tpu.matmul %6, %7, %cst_7 {dimension_numbers = #tpu.dot_dimension_numbers<[1], [0], [0], [1], [0, 0, 1, 1], [], []>} : vector<8x32xbf16>, vector<32x256xbf16>, vector<8x256xf32> -> vector<8x256xf32>
    %9 = vector.extract_strided_slice %1 {offsets = [0, 0], sizes = [4, 256], strides = [1, 1]} : vector<113x256xbf16> to vector<4x256xbf16>
    %10 = arith.extf %9 : vector<4x256xbf16> to vector<4x256xf32>
    %cst_8 = arith.constant dense<0.000000e+00> : vector<4xf32>
    %11 = vector.multi_reduction <add>, %10, %cst_8 [1] : vector<4x256xf32> to vector<4xf32>
    %12 = vector.shape_cast %11 : vector<4xf32> to vector<4x1xf32>
    %cst_9 = arith.constant 2.560000e+02 : f32
    %13 = vector.broadcast %cst_9 : f32 to vector<4x1xf32>
    %14 = arith.divf %12, %13 : vector<4x1xf32>
    %c0_10 = arith.constant 0 : index
    %c0_11 = arith.constant 0 : index
    %15 = vector.load %arg3[%c0_10, %c0_11] : memref<8x4xf32, #tpu.memory_space<vmem>>, vector<8x4xf32>
    %cst_12 = arith.constant dense<0.000000e+00> : vector<8x1xf32>
    %16 = tpu.matmul %15, %14, %cst_12 {dimension_numbers = #tpu.dot_dimension_numbers<[1], [0], [0], [1], [0, 0, 1, 1], [], []>} : vector<8x4xf32>, vector<4x1xf32>, vector<8x1xf32> -> vector<8x1xf32>
    %c0_13 = arith.constant 0 : index
    %c0_14 = arith.constant 0 : index
    %17 = vector.load %arg4[%c0_13, %c0_14] : memref<8x1xf32, #tpu.memory_space<vmem>>, vector<8x1xf32>
    %18 = arith.addf %16, %17 : vector<8x1xf32>
    %cst_15 = arith.constant 0.000000e+00 : f32
    %19 = vector.broadcast %cst_15 : f32 to vector<8x1xf32>
    %20 = arith.maximumf %18, %19 : vector<8x1xf32>
    %c0_16 = arith.constant 0 : index
    %c0_17 = arith.constant 0 : index
    %21 = vector.load %arg6[%c0_16, %c0_17] : memref<8x8xf32, #tpu.memory_space<vmem>>, vector<8x8xf32>
    %cst_18 = arith.constant dense<0.000000e+00> : vector<8x1xf32>
    %22 = tpu.matmul %21, %20, %cst_18 {dimension_numbers = #tpu.dot_dimension_numbers<[1], [0], [0], [1], [0, 0, 1, 1], [], []>} : vector<8x8xf32>, vector<8x1xf32>, vector<8x1xf32> -> vector<8x1xf32>
    %23 = vector.shape_cast %22 : vector<8x1xf32> to vector<8x1xf32>
    %24 = vector.broadcast %23 : vector<8x1xf32> to vector<8x256xf32>
    %25 = arith.addf %8, %24 : vector<8x256xf32>
    %c0_19 = arith.constant 0 : index
    %c0_20 = arith.constant 0 : index
    %c0_21 = arith.constant 0 : index
    %26 = vector.load %arg7[%c0_19, %c0_20, %c0_21] : memref<1x8x256xf32, #tpu.memory_space<vmem>>, vector<1x8x256xf32>
    %27 = vector.shape_cast %26 : vector<1x8x256xf32> to vector<8x256xf32>
    %28 = vector.shape_cast %25 : vector<8x256xf32> to vector<1x8x256xf32>
    tpu.vector_store %arg7[%c0_19, %c0_20, %c0_21], %28 {strides = array<i32>} : memref<1x8x256xf32, #tpu.memory_space<vmem>>, vector<1x8x256xf32>,
    return
  }
  func.func @transform_0(%arg0: i32) -> (i32, i32, i32) {
    %c0_i32 = arith.constant 0 : i32
    %c0_i32_0 = arith.constant 0 : i32
    %c0_i32_1 = arith.constant 0 : i32
    return %arg0, %c0_i32, %c0_i32_0 : i32, i32, i32
  }
  func.func @transform_1(%arg0: i32) -> (i32, i32) {
    %c0_i32 = arith.constant 0 : i32
    %c0_i32_0 = arith.constant 0 : i32
    %c0_i32_1 = arith.constant 0 : i32
    return %c0_i32, %c0_i32_0 : i32, i32
  }
  func.func @transform_2(%arg0: i32) -> (i32, i32) {
    %c0_i32 = arith.constant 0 : i32
    %c0_i32_0 = arith.constant 0 : i32
    %c0_i32_1 = arith.constant 0 : i32
    return %c0_i32, %c0_i32_0 : i32, i32
  }
  func.func @transform_3(%arg0: i32) -> (i32, i32) {
    %c0_i32 = arith.constant 0 : i32
    %c0_i32_0 = arith.constant 0 : i32
    %c0_i32_1 = arith.constant 0 : i32
    return %c0_i32, %c0_i32_0 : i32, i32
  }
  func.func @transform_4(%arg0: i32) -> (i32, i32) {
    %c0_i32 = arith.constant 0 : i32
    %c0_i32_0 = arith.constant 0 : i32
    %c0_i32_1 = arith.constant 0 : i32
    return %c0_i32, %c0_i32_0 : i32, i32
  }
  func.func @transform_5(%arg0: i32) -> (i32, i32) {
    %c0_i32 = arith.constant 0 : i32
    %c0_i32_0 = arith.constant 0 : i32
    %c0_i32_1 = arith.constant 0 : i32
    return %c0_i32, %c0_i32_0 : i32, i32
  }
  func.func @transform_6(%arg0: i32) -> (i32, i32, i32) {
    %c0_i32 = arith.constant 0 : i32
    %c0_i32_0 = arith.constant 0 : i32
    %c0_i32_1 = arith.constant 0 : i32
    return %arg0, %c0_i32, %c0_i32_0 : i32, i32, i32
  }
}

</mosaic_0001>

<llo_original>
// kernel: squeeze.6
$region0: #{squeeze.6}
  %s0 = inlined_call_operand.vmem [shape: bf16[1,3,3,4,8], index: 0, kind: input, shape index: {}]
  %s1 = inlined_call_operand.vmem [shape: bf16[36,8], index: 1, kind: output, shape index: {}]
  $region1: #{squeeze.6} parent=0
    #allocation0 [shape = 'u8[20480]{0}', space=vmem, size = 0x5000, scoped, tag = 'scoped mem for output reshape']
    #allocation1 [shape = 'u8[36864]{0}', space=vmem, size = 0x9000, scoped, tag = 'scoped mem for input reshape']
    %s3 = smul.u32 2, 2
    %s4 = sshll.u32 1, %s3
    %s5 = ssub.s32 %s4, 1
    %s6 = smul.addr 2, 8
    %s7 = scalar_lea.vmem %s0, %s6
    %s8 = sshrl.u32 %s5, 1
    %s9 = sor.u32 %s5, %s8
    %s10 = sand.u32 %s9, 85
    %s11 = sshrl.u32 %s10, 1
    %s12 = sor.u32 %s10, %s11
    %s13 = sand.u32 51, %s12
    %s14 = sshrl.u32 %s13, 2
    %s15 = sor.u32 %s13, %s14
    %s16 = sand.u32 15, %s15
    %v17 = vld [vmem:[%s7] sm:%s16]
    %v18 = vunpack.c.l.bf16 %v17
    %v19 = vunpack.c.h.bf16 %v17
    %s20 = scalar_lea.vmem [#allocation1], 64
    %21 = vst [vmem:[%s20] sm:%s5] %v18
    %s22 = smul.addr 2, 7
    %s23 = scalar_lea.vmem %s0, %s22
    %s24 = sshrl.u32 %s5, 1
    %s25 = sor.u32 %s5, %s24
    %s26 = sand.u32 %s25, 85
    %s27 = sshrl.u32 %s26, 1
    %s28 = sor.u32 %s26, %s27
    %s29 = sand.u32 51, %s28
    %s30 = sshrl.u32 %s29, 2
    %s31 = sor.u32 %s29, %s30
    %s32 = sand.u32 15, %s31
    %v33 = vld [vmem:[%s23] sm:%s32]
    %v34 = vunpack.c.l.bf16 %v33
    %v35 = vunpack.c.h.bf16 %v33
    %s36 = scalar_lea.vmem [#allocation1], 56
    %37 = vst [vmem:[%s36] sm:%s5] %v34
    %s38 = smul.addr 2, 6
    %s39 = scalar_lea.vmem %s0, %s38
    %s40 = sshrl.u32 %s5, 1
    %s41 = sor.u32 %s5, %s40
    %s42 = sand.u32 %s41, 85
    %s43 = sshrl.u32 %s42, 1
    %s44 = sor.u32 %s42, %s43
    %s45 = sand.u32 51, %s44
    %s46 = sshrl.u32 %s45, 2
    %s47 = sor.u32 %s45, %s46
    %s48 = sand.u32 15, %s47
    %v49 = vld [vmem:[%s39] sm:%s48]
    %v50 = vunpack.c.l.bf16 %v49
    %v51 = vunpack.c.h.bf16 %v49
    %s52 = scalar_lea.vmem [#allocation1], 48
    %53 = vst [vmem:[%s52] sm:%s5] %v50
    %s54 = smul.addr 2, 5
    %s55 = scalar_lea.vmem %s0, %s54
    %s56 = sshrl.u32 %s5, 1
    %s57 = sor.u32 %s5, %s56
    %s58 = sand.u32 %s57, 85
    %s59 = sshrl.u32 %s58, 1
    %s60 = sor.u32 %s58, %s59
    %s61 = sand.u32 51, %s60
    %s62 = sshrl.u32 %s61, 2
    %s63 = sor.u32 %s61, %s62
    %s64 = sand.u32 15, %s63
    %v65 = vld [vmem:[%s55] sm:%s64]
    %v66 = vunpack.c.l.bf16 %v65
    %v67 = vunpack.c.h.bf16 %v65
    %s68 = scalar_lea.vmem [#allocation1], 40
    %69 = vst [vmem:[%s68] sm:%s5] %v66
    %s70 = smul.addr 2, 4
    %s71 = scalar_lea.vmem %s0, %s70
    %s72 = sshrl.u32 %s5, 1
    %s73 = sor.u32 %s5, %s72
    %s74 = sand.u32 %s73, 85
    %s75 = sshrl.u32 %s74, 1
    %s76 = sor.u32 %s74, %s75
    %s77 = sand.u32 51, %s76
    %s78 = sshrl.u32 %s77, 2
    %s79 = sor.u32 %s77, %s78
    %s80 = sand.u32 15, %s79
    %v81 = vld [vmem:[%s71] sm:%s80]
    %v82 = vunpack.c.l.bf16 %v81
    %v83 = vunpack.c.h.bf16 %v81
    %s84 = scalar_lea.vmem [#allocation1], 32
    %85 = vst [vmem:[%s84] sm:%s5] %v82
    %s86 = smul.addr 2, 3
    %s87 = scalar_lea.vmem %s0, %s86
    %s88 = sshrl.u32 %s5, 1
    %s89 = sor.u32 %s5, %s88
    %s90 = sand.u32 %s89, 85
    %s91 = sshrl.u32 %s90, 1
    %s92 = sor.u32 %s90, %s91
    %s93 = sand.u32 51, %s92
    %s94 = sshrl.u32 %s93, 2
    %s95 = sor.u32 %s93, %s94
    %s96 = sand.u32 15, %s95
    %v97 = vld [vmem:[%s87] sm:%s96]
    %v98 = vunpack.c.l.bf16 %v97
    %v99 = vunpack.c.h.bf16 %v97
    %s100 = scalar_lea.vmem [#allocation1], 24
    %101 = vst [vmem:[%s100] sm:%s5] %v98
    %s102 = smul.addr 2, 2
    %s103 = scalar_lea.vmem %s0, %s102
    %s104 = sshrl.u32 %s5, 1
    %s105 = sor.u32 %s5, %s104
    %s106 = sand.u32 %s105, 85
    %s107 = sshrl.u32 %s106, 1
    %s108 = sor.u32 %s106, %s107
    %s109 = sand.u32 51, %s108
    %s110 = sshrl.u32 %s109, 2
    %s111 = sor.u32 %s109, %s110
    %s112 = sand.u32 15, %s111
    %v113 = vld [vmem:[%s103] sm:%s112]
    %v114 = vunpack.c.l.bf16 %v113
    %v115 = vunpack.c.h.bf16 %v113
    %s116 = scalar_lea.vmem [#allocation1], 16
    %117 = vst [vmem:[%s116] sm:%s5] %v114
    %s118 = scalar_lea.vmem %s0, 2
    %s119 = sshrl.u32 %s5, 1
    %s120 = sor.u32 %s5, %s119
    %s121 = sand.u32 %s120, 85
    %s122 = sshrl.u32 %s121, 1
    %s123 = sor.u32 %s121, %s122
    %s124 = sand.u32 51, %s123
    %s125 = sshrl.u32 %s124, 2
    %s126 = sor.u32 %s124, %s125
    %s127 = sand.u32 15, %s126
    %v128 = vld [vmem:[%s118] sm:%s127]
    %v129 = vunpack.c.l.bf16 %v128
    %v130 = vunpack.c.h.bf16 %v128
    %s131 = scalar_lea.vmem [#allocation1], 8
    %132 = vst [vmem:[%s131] sm:%s5] %v129
    %s133 = sshrl.u32 %s5, 1
    %s134 = sor.u32 %s5, %s133
    %s135 = sand.u32 %s134, 85
    %s136 = sshrl.u32 %s135, 1
    %s137 = sor.u32 %s135, %s136
    %s138 = sand.u32 51, %s137
    %s139 = sshrl.u32 %s138, 2
    %s140 = sor.u32 %s138, %s139
    %s141 = sand.u32 15, %s140
    %v142 = vld [vmem:[%s0] sm:%s141]
    %v143 = vunpack.c.l.bf16 %v142
    %v144 = vunpack.c.h.bf16 %v142
    %145 = vst [vmem:[#allocation1] sm:%s5] %v143
    %v146 = vld [vmem:[#allocation1] sm:$0xf]
    %vm147 = vcmask 64512
    %148 = vst.msk [vmem:[#allocation0] sm:$0xf] %vm147, %v146
    %s149 = scalar_lea.vmem [#allocation1], 8
    %v150 = vld [vmem:[%s149] sm:$0xf]
    %vm151 = vcmask 64512
    %s152 = scalar_lea.vmem [#allocation0], 4
    %153 = vst.msk [vmem:[%s152] sm:$0xf] %vm151, %v150
    %s154 = scalar_lea.vmem [#allocation1], 16
    %v155 = vld [vmem:[%s154] sm:$0xf]
    %vm156 = vcmask 64512
    %s157 = scalar_lea.vmem [#allocation0], 8
    %158 = vst.msk [vmem:[%s157] sm:$0xf] %vm156, %v155
    %s159 = scalar_lea.vmem [#allocation1], 24
    %v160 = vld [vmem:[%s159] sm:$0xf]
    %vm161 = vcmask 64512
    %s162 = scalar_lea.vmem [#allocation0], 12
    %163 = vst.msk [vmem:[%s162] sm:$0xf] %vm161, %v160
    %s164 = scalar_lea.vmem [#allocation1], 32
    %v165 = vld [vmem:[%s164] sm:$0xf]
    %vm166 = vcmask 64512
    %s167 = scalar_lea.vmem [#allocation0], 16
    %168 = vst.msk [vmem:[%s167] sm:$0xf] %vm166, %v165
    %s169 = scalar_lea.vmem [#allocation1], 40
    %v170 = vld [vmem:[%s169] sm:$0xf]
    %vm171 = vcmask 64512
    %s172 = scalar_lea.vmem [#allocation0], 20
    %173 = vst.msk [vmem:[%s172] sm:$0xf] %vm171, %v170
    %s174 = scalar_lea.vmem [#allocation1], 48
    %v175 = vld [vmem:[%s174] sm:$0xf]
    %vm176 = vcmask 64512
    %s177 = scalar_lea.vmem [#allocation0], 24
    %178 = vst.msk [vmem:[%s177] sm:$0xf] %vm176, %v175
    %s179 = scalar_lea.vmem [#allocation1], 56
    %v180 = vld [vmem:[%s179] sm:$0xf]
    %vm181 = vcmask 64512
    %s182 = scalar_lea.vmem [#allocation0], 28
    %183 = vst.msk [vmem:[%s182] sm:$0xf] %vm181, %v180
    %s184 = scalar_lea.vmem [#allocation1], 64
    %v185 = vld [vmem:[%s184] sm:$0xf]
    %vm186 = vcmask 64512
    %s187 = scalar_lea.vmem [#allocation0], 32
    %188 = vst.msk [vmem:[%s187] sm:$0xf] %vm186, %v185
    %s190 = smul.u32 4, 2
    %s191 = sshll.u32 1, %s190
    %s192 = ssub.s32 %s191, 1
    %s193 = sshrl.u32 %s190, 1
    %v194 = vld [vmem:[#allocation0] sm:%s192]
    %v195 = vpack.c.bf16 0.0, %v194
    %s196 = sshll.u32 1, %s193
    %s197 = ssub.s32 %s196, 1
    %198 = vst [vmem:[%s1] sm:%s197] %v195
    %s199 = scalar_lea.vmem [#allocation0], 8
    %v200 = vld [vmem:[%s199] sm:%s192]
    %v201 = vpack.c.bf16 0.0, %v200
    %s202 = sshll.u32 1, %s193
    %s203 = ssub.s32 %s202, 1
    %s204 = scalar_lea.vmem %s1, 4
    %205 = vst [vmem:[%s204] sm:%s203] %v201
    %s206 = scalar_lea.vmem [#allocation0], 16
    %v207 = vld [vmem:[%s206] sm:%s192]
    %v208 = vpack.c.bf16 0.0, %v207
    %s209 = sshll.u32 1, %s193
    %s210 = ssub.s32 %s209, 1
    %s211 = smul.addr 4, 2
    %s212 = scalar_lea.vmem %s1, %s211
    %213 = vst [vmem:[%s212] sm:%s210] %v208
    %s214 = scalar_lea.vmem [#allocation0], 24
    %v215 = vld [vmem:[%s214] sm:%s192]
    %v216 = vpack.c.bf16 0.0, %v215
    %s217 = sshll.u32 1, %s193
    %s218 = ssub.s32 %s217, 1
    %s219 = smul.addr 4, 3
    %s220 = scalar_lea.vmem %s1, %s219
    %221 = vst [vmem:[%s220] sm:%s218] %v216
    %s222 = scalar_lea.vmem [#allocation0], 32
    %v223 = vld [vmem:[%s222] sm:%s192]
    %v224 = vpack.c.bf16 0.0, %v223
    %s225 = sshll.u32 1, %s193
    %s226 = ssub.s32 %s225, 1
    %s227 = smul.addr 4, 4
    %s228 = scalar_lea.vmem %s1, %s227
    %229 = vst [vmem:[%s228] sm:%s226] %v224

// kernel: _aspp_forward_impl.1
$region0: #{_aspp_forward_impl.1}
  #allocation0 [shape = 'u32[]', space=smem, size = 0x4, offset = 0x4, fixed_abs, tag = 'smem constant byte address 0x4 - core index']
  #allocation1 [shape = 'u32[144,128]{1,0:T(1,128)}', space=vmem, size = 0x12000, scoped, tag = 'internal scratch']
  %s0 = inlined_call_operand.vmem [shape: bf16[2,113,256], index: 0, kind: input, shape index: {}]
  %s1 = inlined_call_operand.vmem [shape: bf16[32,113], index: 1, kind: input, shape index: {}]
  %s2 = inlined_call_operand.vmem [shape: f32[8,4], index: 2, kind: input, shape index: {}]
  %s3 = inlined_call_operand.vmem [shape: f32[8,1], index: 3, kind: input, shape index: {}]
  %s4 = inlined_call_operand.vmem [shape: bf16[8,32], index: 4, kind: input, shape index: {}]
  %s5 = inlined_call_operand.vmem [shape: f32[8,8], index: 5, kind: input, shape index: {}]
  %s6 = inlined_call_operand.vmem [shape: f32[2,8,256], index: 6, kind: output, shape index: {}]
  %s7 = sld [smem:[#allocation0]]
  $region57: #{_aspp_forward_impl.1} parent=0
    _
  %s9 = ssub.s32 1, %s7
  %s10 = scalar_select 0, %s9, %s7
  loop: start=0, step=1, limit=4
  $region2: #{_aspp_forward_impl.1} parent=0 // loop_pre_header
    _
  $region3: #{_aspp_forward_impl.1} parent=0 // loop_header
    %s12 = sphi 0, %s16
    %p13 = scmp.ge.s32.totalorder %s12, 4
    %s22 = sphi 0, %s24
    %s25 = sphi 0, %s22
    %s26 = sphi 0, %s25
    %s42 = sphi 0, %s26
    %s46 = sphi 0, %s46
    %s48 = sphi 0, %s46
    %s49 = sphi 0, %s48
    %s63 = sphi 0, %s49
    %s67 = sphi 0, %s67
    %s69 = sphi 0, %s67
    %s70 = sphi 0, %s69
    %s84 = sphi 0, %s70
    %s88 = sphi 0, %s88
    %s90 = sphi 0, %s88
    %s91 = sphi 0, %s90
    %s105 = sphi 0, %s91
    %s109 = sphi 0, %s109
    %s111 = sphi 0, %s109
    %s112 = sphi 0, %s111
    %s126 = sphi 0, %s112
    %s130 = sphi 0, %s130
    %s132 = sphi 0, %s130
    %s133 = sphi 0, %s132
    %s147 = sphi 0, %s133
    %s153 = sphi 0, %s155
    %s156 = sphi 0, %s153
    %s157 = sphi 0, %s156
    %s173 = sphi 0, %s157
  $region4: #{_aspp_forward_impl.1} parent=0 // loop_header_branch
    %15 = sbr.rel (%p13) target = $region8
  $region5: #{_aspp_forward_impl.1} parent=0 // loop_body
    %s17 = ssub.s32 %s12, 1
    %s18 = ssub.s32 %s12, 2
    %s19 = sadd.s32 %s12, 1
    %s20 = ssub.s32 %s12, %s19
    %p21 = scmp.eq.s32.totalorder %s20, 0
    %s23 = sadd.s32 %s22, 1
    %s24 = scalar_select %p21, %s22, %s23
    %p27 = pneg %p21
    %p28 = scmp.eq.s32.totalorder %s12, 1
    %p29 = por %p27, %p28
    %p30 = scmp.ne.s32.totalorder %s22, %s25
    %p31 = scmp.eq.s32.totalorder %s12, 0
    %p32 = por %p30, %p31
    %p33 = scmp.ne.s32.totalorder %s22, %s25
    %p34 = scmp.eq.s32.totalorder %s17, 1
    %p35 = por %p33, %p34
    %p36 = scmp.ne.s32.totalorder %s25, %s26
    %p37 = scmp.eq.s32.totalorder %s17, 0
    %p38 = por %p36, %p37
    %p39 = scmp.ne.s32.totalorder %s25, %s26
    %p40 = scmp.eq.s32.totalorder %s18, 1
    %p41 = por %p39, %p40
    %p43 = scmp.ne.s32.totalorder %s26, %s42
    %p44 = scmp.eq.s32.totalorder %s18, 0
    %p45 = por %p43, %p44
    %s47 = sadd.s32 %s46, 1
    %p50 = scmp.eq.s32.totalorder %s12, 1
    %p51 = scmp.ne.s32.totalorder %s46, %s48
    %p52 = scmp.eq.s32.totalorder %s12, 0
    %p53 = por %p51, %p52
    %p54 = scmp.ne.s32.totalorder %s46, %s48
    %p55 = scmp.eq.s32.totalorder %s17, 1
    %p56 = por %p54, %p55
    %p57 = scmp.ne.s32.totalorder %s48, %s49
    %p58 = scmp.eq.s32.totalorder %s17, 0
    %p59 = por %p57, %p58
    %p60 = scmp.ne.s32.totalorder %s48, %s49
    %p61 = scmp.eq.s32.totalorder %s18, 1
    %p62 = por %p60, %p61
    %p64 = scmp.ne.s32.totalorder %s49, %s63
    %p65 = scmp.eq.s32.totalorder %s18, 0
    %p66 = por %p64, %p65
    %s68 = sadd.s32 %s67, 1
    %p71 = scmp.eq.s32.totalorder %s12, 1
    %p72 = scmp.ne.s32.totalorder %s67, %s69
    %p73 = scmp.eq.s32.totalorder %s12, 0
    %p74 = por %p72, %p73
    %p75 = scmp.ne.s32.totalorder %s67, %s69
    %p76 = scmp.eq.s32.totalorder %s17, 1
    %p77 = por %p75, %p76
    %p78 = scmp.ne.s32.totalorder %s69, %s70
    %p79 = scmp.eq.s32.totalorder %s17, 0
    %p80 = por %p78, %p79
    %p81 = scmp.ne.s32.totalorder %s69, %s70
    %p82 = scmp.eq.s32.totalorder %s18, 1
    %p83 = por %p81, %p82
    %p85 = scmp.ne.s32.totalorder %s70, %s84
    %p86 = scmp.eq.s32.totalorder %s18, 0
    %p87 = por %p85, %p86
    %s89 = sadd.s32 %s88, 1
    %p92 = scmp.eq.s32.totalorder %s12, 1
    %p93 = scmp.ne.s32.totalorder %s88, %s90
    %p94 = scmp.eq.s32.totalorder %s12, 0
    %p95 = por %p93, %p94
    %p96 = scmp.ne.s32.totalorder %s88, %s90
    %p97 = scmp.eq.s32.totalorder %s17, 1
    %p98 = por %p96, %p97
    %p99 = scmp.ne.s32.totalorder %s90, %s91
    %p100 = scmp.eq.s32.totalorder %s17, 0
    %p101 = por %p99, %p100
    %p102 = scmp.ne.s32.totalorder %s90, %s91
    %p103 = scmp.eq.s32.totalorder %s18, 1
    %p104 = por %p102, %p103
    %p106 = scmp.ne.s32.totalorder %s91, %s105
    %p107 = scmp.eq.s32.totalorder %s18, 0
    %p108 = por %p106, %p107
    %s110 = sadd.s32 %s109, 1
    %p113 = scmp.eq.s32.totalorder %s12, 1
    %p114 = scmp.ne.s32.totalorder %s109, %s111
    %p115 = scmp.eq.s32.totalorder %s12, 0
    %p116 = por %p114, %p115
    %p117 = scmp.ne.s32.totalorder %s109, %s111
    %p118 = scmp.eq.s32.totalorder %s17, 1
    %p119 = por %p117, %p118
    %p120 = scmp.ne.s32.totalorder %s111, %s112
    %p121 = scmp.eq.s32.totalorder %s17, 0
    %p122 = por %p120, %p121
    %p123 = scmp.ne.s32.totalorder %s111, %s112
    %p124 = scmp.eq.s32.totalorder %s18, 1
    %p125 = por %p123, %p124
    %p127 = scmp.ne.s32.totalorder %s112, %s126
    %p128 = scmp.eq.s32.totalorder %s18, 0
    %p129 = por %p127, %p128
    %s131 = sadd.s32 %s130, 1
    %p134 = scmp.eq.s32.totalorder %s12, 1
    %p135 = scmp.ne.s32.totalorder %s130, %s132
    %p136 = scmp.eq.s32.totalorder %s12, 0
    %p137 = por %p135, %p136
    %p138 = scmp.ne.s32.totalorder %s130, %s132
    %p139 = scmp.eq.s32.totalorder %s17, 1
    %p140 = por %p138, %p139
    %p141 = scmp.ne.s32.totalorder %s132, %s133
    %p142 = scmp.eq.s32.totalorder %s17, 0
    %p143 = por %p141, %p142
    %p144 = scmp.ne.s32.totalorder %s132, %s133
    %p145 = scmp.eq.s32.totalorder %s18, 1
    %p146 = por %p144, %p145
    %p148 = scmp.ne.s32.totalorder %s133, %s147
    %p149 = scmp.eq.s32.totalorder %s18, 0
    %p150 = por %p148, %p149
    %s151 = ssub.s32 %s12, %s19
    %p152 = scmp.eq.s32.totalorder %s151, 0
    %s154 = sadd.s32 %s153, 1
    %s155 = scalar_select %p152, %s153, %s154
    %p158 = pneg %p152
    %p159 = scmp.eq.s32.totalorder %s12, 1
    %p160 = por %p158, %p159
    %p161 = scmp.ne.s32.totalorder %s153, %s156
    %p162 = scmp.eq.s32.totalorder %s12, 0
    %p163 = por %p161, %p162
    %p164 = scmp.ne.s32.totalorder %s153, %s156
    %p165 = scmp.eq.s32.totalorder %s17, 1
    %p166 = por %p164, %p165
    %p167 = scmp.ne.s32.totalorder %s156, %s157
    %p168 = scmp.eq.s32.totalorder %s17, 0
    %p169 = por %p167, %p168
    %p170 = scmp.ne.s32.totalorder %s156, %s157
    %p171 = scmp.eq.s32.totalorder %s18, 1
    %p172 = por %p170, %p171
    %p174 = scmp.ne.s32.totalorder %s157, %s173
    %p175 = scmp.eq.s32.totalorder %s18, 0
    %p176 = por %p174, %p175
    %p177 = scmp.le.s32.totalorder 1, %s12
    %p178 = scmp.lt.s32.totalorder %s12, 3
    %p179 = pnand %p177, %p178
    %p180 = pneg %p179
    // Predicated region
    $region9: #{_aspp_forward_impl.1} parent=5 // pred_check
      _
    $region10: #{_aspp_forward_impl.1} parent=5 // pred_check_branch
      %182 = sbr.rel (%p179) target = $region12
    $region11: #{_aspp_forward_impl.1} parent=5 // pred_region
      %s183 = ssub.s32 %s12, 1
      // Predicated region
      $region13: #{_aspp_forward_impl.1} parent=11 // pred_check
        %p184 = pneg %p59
      $region14: #{_aspp_forward_impl.1} parent=11 // pred_check_branch
        %186 = sbr.rel (%p184) target = $region16
      $region15: #{_aspp_forward_impl.1} parent=11 // pred_region
        _
      $region16: #{_aspp_forward_impl.1} parent=11 // pred_fallthru
        _
      // Predicated region
      $region17: #{_aspp_forward_impl.1} parent=11 // pred_check
        %p187 = pneg %p80
      $region18: #{_aspp_forward_impl.1} parent=11 // pred_check_branch
        %189 = sbr.rel (%p187) target = $region20
      $region19: #{_aspp_forward_impl.1} parent=11 // pred_region
        _
      $region20: #{_aspp_forward_impl.1} parent=11 // pred_fallthru
        _
      // Predicated region
      $region21: #{_aspp_forward_impl.1} parent=11 // pred_check
        %p190 = pneg %p101
      $region22: #{_aspp_forward_impl.1} parent=11 // pred_check_branch
        %192 = sbr.rel (%p190) target = $region24
      $region23: #{_aspp_forward_impl.1} parent=11 // pred_region
        _
      $region24: #{_aspp_forward_impl.1} parent=11 // pred_fallthru
        _
      // Predicated region
      $region25: #{_aspp_forward_impl.1} parent=11 // pred_check
        %p193 = pneg %p122
      $region26: #{_aspp_forward_impl.1} parent=11 // pred_check_branch
        %195 = sbr.rel (%p193) target = $region28
      $region27: #{_aspp_forward_impl.1} parent=11 // pred_region
        _
      $region28: #{_aspp_forward_impl.1} parent=11 // pred_fallthru
        _
      // Predicated region
      $region29: #{_aspp_forward_impl.1} parent=11 // pred_check
        %p196 = pneg %p143
      $region30: #{_aspp_forward_impl.1} parent=11 // pred_check_branch
        %198 = sbr.rel (%p196) target = $region32
      $region31: #{_aspp_forward_impl.1} parent=11 // pred_region
        _
      $region32: #{_aspp_forward_impl.1} parent=11 // pred_fallthru
        _
    $region12: #{_aspp_forward_impl.1} parent=5 // pred_fallthru
      _
    %p199 = scmp.lt.s32.totalorder %s12, 2
    // Predicated region
    $region33: #{_aspp_forward_impl.1} parent=5 // pred_check
      %p200 = pneg %p199
    $region34: #{_aspp_forward_impl.1} parent=5 // pred_check_branch
      %202 = sbr.rel (%p200) target = $region36
    $region35: #{_aspp_forward_impl.1} parent=5 // pred_region
      // Predicated region
      $region37: #{_aspp_forward_impl.1} parent=35 // pred_check
        %p203 = pneg %p32
      $region38: #{_aspp_forward_impl.1} parent=35 // pred_check_branch
        %205 = sbr.rel (%p203) target = $region40
      $region39: #{_aspp_forward_impl.1} parent=35 // pred_region
        %p206 = scmp.lt.s32.totalorder %s12, 1
        %s207 = scalar_select %p206, %s12, 1
        %s208 = smul.addr %s207, 30
        %s209 = smul.addr %s208, 4
        %s210 = scalar_lea.vmem %s0, %s209
      $region40: #{_aspp_forward_impl.1} parent=35 // pred_fallthru
        _
    $region36: #{_aspp_forward_impl.1} parent=5 // pred_fallthru
      _
    %p211 = scmp.le.s32.totalorder 1, %s12
    %p212 = scmp.lt.s32.totalorder %s12, 3
    %p213 = pnand %p211, %p212
    %p214 = pneg %p213
    // Predicated region
    $region41: #{_aspp_forward_impl.1} parent=5 // pred_check
      _
    $region42: #{_aspp_forward_impl.1} parent=5 // pred_check_branch
      %216 = sbr.rel (%p213) target = $region44
    $region43: #{_aspp_forward_impl.1} parent=5 // pred_region
      %s217 = ssub.s32 %s12, 1
      %p218 = scmp.lt.s32.totalorder %s17, 1
      %s219 = scalar_select %p218, %s17, 1
      %s220 = smul.addr %s219, 30
      %s221 = smul.addr %s220, 4
      %s222 = scalar_lea.vmem %s0, %s221
      %p223 = pneg %p38
      %p224 = pneg %p35
      %p225 = pneg %p59
      %p226 = pneg %p56
      %p227 = pneg %p80
      %p228 = pneg %p77
      %p229 = pneg %p101
      %p230 = pneg %p98
      %p231 = pneg %p122
      %p232 = pneg %p119
      %p233 = pneg %p143
      %p234 = pneg %p140
      %p235 = pneg %p169
      %p236 = pneg %p166
      %p237 = scmp.lt.s32.totalorder %s17, 1
      %s238 = scalar_select %p237, %s17, 1
      %s239 = smul.addr %s238, 2
      %s240 = smul.addr %s239, 8
      %s241 = scalar_lea.vmem %s6, %s240
      %p242 = scmp.lt.s32.totalorder %s17, 1
      %s243 = scalar_select %p242, %s17, 1
      %s244 = smul.addr %s243, 30
      %s245 = smul.addr %s244, 4
      %s246 = scalar_lea.vmem %s0, %s245
      %p247 = scmp.lt.s32.totalorder %s17, 1
      %s248 = scalar_select %p247, %s17, 1
      %s249 = smul.addr %s248, 2
      %s250 = smul.addr %s249, 8
      %s251 = scalar_lea.vmem %s6, %s250
      %v253 = vld [vmem:[%s246] sm:$0xff]
      %v254 = vld [vmem:[%s246 + $0x8] sm:$0xff]
      %v255 = vld [vmem:[%s246 + $0x10] sm:$0xff]
      %v256 = vld [vmem:[%s246 + $0x18] sm:$0xff]
      %v257 = vld [vmem:[%s246 + $0x20] sm:$0xff]
      %v258 = vld [vmem:[%s246 + $0x28] sm:$0xff]
      %v259 = vld [vmem:[%s246 + $0x30] sm:$0xff]
      %v260 = vld [vmem:[%s246 + $0x38] sm:$0xff]
      %v261 = vld [vmem:[%s246 + $0x40] sm:$0xff]
      %v262 = vld [vmem:[%s246 + $0x48] sm:$0xff]
      %v263 = vld [vmem:[%s246 + $0x50] sm:$0xff]
      %v264 = vld [vmem:[%s246 + $0x58] sm:$0xff]
      %v265 = vld [vmem:[%s246 + $0x60] sm:$0xff]
      %v266 = vld [vmem:[%s246 + $0x68] sm:$0xff]
      %v267 = vld [vmem:[%s246 + $0x70] sm:$0x11]
      %v268 = vld [vmem:[%s1] sm:$0xf]
      %v269 = vld [vmem:[%s1 + $0x4] sm:$0xf]
      %v270 = vld [vmem:[%s1 + $0x8] sm:$0xf]
      %v271 = vld [vmem:[%s1 + $0xc] sm:$0xf]
      %v276 = vunpack.c.l.b16 %v268
      %v277 = vunpack.c.l.b16 %v269
      %v278 = vunpack.c.l.b16 %v270
      %v279 = vunpack.c.l.b16 %v271
      %v280 = vpack.c.b16 %v277, %v276
      %v281 = vpack.c.b16 %v279, %v278
      %v297 = vunpack.c.l.b16 %v253
      %v298 = vunpack.c.h.b16 %v253
      %v299 = vunpack.c.l.b16 %v254
      %v300 = vunpack.c.h.b16 %v254
      %v301 = vunpack.c.l.b16 %v255
      %v302 = vunpack.c.h.b16 %v255
      %v303 = vunpack.c.l.b16 %v256
      %v304 = vunpack.c.h.b16 %v256
      %v305 = vunpack.c.l.b16 %v257
      %v306 = vunpack.c.h.b16 %v257
      %v307 = vunpack.c.l.b16 %v258
      %v308 = vunpack.c.h.b16 %v258
      %v309 = vunpack.c.l.b16 %v259
      %v310 = vunpack.c.h.b16 %v259
      %v311 = vunpack.c.l.b16 %v260
      %v312 = vunpack.c.h.b16 %v260
      %v313 = vunpack.c.l.b16 %v261
      %v314 = vunpack.c.h.b16 %v261
      %v315 = vunpack.c.l.b16 %v262
      %v316 = vunpack.c.h.b16 %v262
      %v317 = vunpack.c.l.b16 %v263
      %v318 = vunpack.c.h.b16 %v263
      %v319 = vunpack.c.l.b16 %v264
      %v320 = vunpack.c.h.b16 %v264
      %v321 = vunpack.c.l.b16 %v265
      %v322 = vunpack.c.h.b16 %v265
      %v323 = vunpack.c.l.b16 %v266
      %v324 = vunpack.c.h.b16 %v266
      %v325 = vunpack.c.l.b16 %v267
      %v326 = vunpack.c.h.b16 %v267
      %v327 = vpack.c.b16 %v299, %v297
      %v328 = vpack.c.b16 %v300, %v298
      %v329 = vpack.c.b16 %v303, %v301
      %v330 = vpack.c.b16 %v304, %v302
      %v331 = vpack.c.b16 %v307, %v305
      %v332 = vpack.c.b16 %v308, %v306
      %v333 = vpack.c.b16 %v311, %v309
      %v334 = vpack.c.b16 %v312, %v310
      %v335 = vpack.c.b16 %v315, %v313
      %v336 = vpack.c.b16 %v316, %v314
      %v337 = vpack.c.b16 %v319, %v317
      %v338 = vpack.c.b16 %v320, %v318
      %v339 = vpack.c.b16 %v323, %v321
      %v340 = vpack.c.b16 %v324, %v322
      %v341 = vpack.c.b16 %v325, %v325
      %v342 = vpack.c.b16 %v326, %v326
      %vm357 = vcmask 924672
      %v359 = vsel %vm357, %v280, 0
      %v362 = vsel %vm357, %v281, 0
      %vm364 = vcmask 1040384
      %v365 = vsel 0, 4294967295, 65535
      %v366 = vsel %vm364, %v365, 0
      %v368 = vand.u32 %v341, %v366
      %v371 = vand.u32 %v342, %v366
      %373 = vmatprep.subr.bf16.mxu0 %v371
      %374 = vmatpush1.bf16.msra.mxu0 %v368
      %375 = vmatprep.subr.bf16.mxu0 %v340
      %376 = vmatpush1.bf16.msra.mxu0 %v339
      %377 = vmatprep.subr.bf16.mxu0 %v338
      %378 = vmatpush1.bf16.msra.mxu0 %v337
      %379 = vmatprep.subr.bf16.mxu0 %v336
      %380 = vmatpush1.bf16.msra.mxu0 %v335
      %381 = vmatprep.subr.bf16.mxu0 %v334
      %382 = vmatpush1.bf16.msra.mxu0 %v333
      %383 = vmatprep.subr.bf16.mxu0 %v332
      %384 = vmatpush1.bf16.msra.mxu0 %v331
      %385 = vmatprep.subr.bf16.mxu0 %v330
      %386 = vmatpush1.bf16.msra.mxu0 %v329
      %387 = vmatprep.subr.bf16.mxu0 %v328
      %388 = vmatpush1.bf16.msra.mxu0 %v327
      %389 = vmatprep.subr.bf16.mxu0 0
      %390 = vmatpush2.bf16.msra.mxu0 0
      %391 = vmatprep.subr.bf16.mxu0 0
      %392 = vmatpush2.bf16.msra.mxu0 0
      %393 = vmatprep.subr.bf16.mxu0 0
      %394 = vmatpush2.bf16.msra.mxu0 0
      %395 = vmatprep.subr.bf16.mxu0 0
      %396 = vmatpush2.bf16.msra.mxu0 0
      %397 = vmatprep.subr.bf16.mxu0 0
      %398 = vmatpush2.bf16.msra.mxu0 0
      %399 = vmatprep.subr.bf16.mxu0 0
      %400 = vmatpush2.bf16.msra.mxu0 0
      %401 = vmatprep.subr.bf16.mxu0 0
      %402 = vmatpush2.bf16.msra.mxu0 0
      %403 = vmatprep.subr.bf16.mxu0 0
      %404 = vmatpush2.bf16.msra.mxu0 0
      %405 = vmatprep.mubr.bf16.mxu0 0
      %406 = vmatmul.mubr.bf16.gmra.mxu0 %v359
      %v407 = vpop.f32.mrf.mxu0
      %v408 = vadd.f32 0.0, %v407
      %v409 = vpop.f32.mrf.mxu0
      %v410 = vadd.f32 0.0, %v409
      %v411 = vpop.f32.mrf.mxu0
      %v412 = vadd.f32 0.0, %v411
      %v413 = vpop.f32.mrf.mxu0
      %v414 = vadd.f32 0.0, %v413
      %415 = vmatprep.mubr.bf16.mxu0 0
      %416 = vmatmul.mubr.bf16.gmra.mxu0 %v362
      %v417 = vpop.f32.mrf.mxu0
      %v418 = vadd.f32 0.0, %v417
      %v419 = vpop.f32.mrf.mxu0
      %v420 = vadd.f32 0.0, %v419
      %v421 = vpop.f32.mrf.mxu0
      %v422 = vadd.f32 0.0, %v421
      %v423 = vpop.f32.mrf.mxu0
      %v424 = vadd.f32 0.0, %v423
      %425 = vdwg.mxu0
      %v426 = vmax.f32 %v408, 0.0
      %v427 = vmax.f32 %v410, 0.0
      %v428 = vmax.f32 %v412, 0.0
      %v429 = vmax.f32 %v414, 0.0
      %v430 = vmax.f32 %v418, 0.0
      %v431 = vmax.f32 %v420, 0.0
      %v432 = vmax.f32 %v422, 0.0
      %v433 = vmax.f32 %v424, 0.0
      %v434 = vld [vmem:[%s4] sm:$0xf]
      %v435 = vpack.c.bf16 %v428, %v426
      %v436 = vpack.c.bf16 %v429, %v427
      %v437 = vpack.c.bf16 %v432, %v430
      %v438 = vpack.c.bf16 %v433, %v431
      %v439 = vunpack.c.l.bf16 %v253
      %v440 = vunpack.c.h.bf16 %v253
      %vm441 = vcmask 1043456
      %v442 = vsel %vm441, %v439, 0.0
      %v443 = vsel %vm441, %v440, 0.0
      %v444 = vadd.f32 %v442, %v443
      %445 = vadd.xlane.f32.xlu0 %v444
      %v446 = vpop.xlane.xlu0 %445
      %v447 = vrcp.pop 256.0
      %v448 = vmul.f32 %v446, %v447
      %v449 = vld [vmem:[%s2] sm:$0xff]
      %v450 = vld [vmem:[%s3] sm:$0xff]
      %vm451 = vcmask 31744
      %v453 = vsel %vm451, %v449, 0
      %v456 = vsel %vm441, %v448, 0
      %458 = vmatprep.subr.mxu0 0.0
      %459 = vmatpush1.msra.mxu0 0.0
      %460 = vmatprep.subr.mxu0 0.0
      %461 = vmatpush1.msra.mxu0 0.0
      %462 = vmatprep.subr.mxu0 0.0
      %463 = vmatpush1.msra.mxu0 0.0
      %464 = vmatprep.subr.mxu0 0.0
      %465 = vmatpush1.msra.mxu0 0.0
      %466 = vmatprep.subr.mxu0 0.0
      %467 = vmatpush1.msra.mxu0 0.0
      %468 = vmatprep.subr.mxu0 0.0
      %469 = vmatpush1.msra.mxu0 0.0
      %470 = vmatprep.subr.mxu0 0.0
      %471 = vmatpush1.msra.mxu0 0.0
      %472 = vmatprep.subr.mxu0 0.0
      %473 = vmatpush1.msra.mxu0 0.0
      %474 = vmatprep.subr.mxu0 0.0
      %475 = vmatpush1.msra.mxu0 0.0
      %476 = vmatprep.subr.mxu0 0.0
      %477 = vmatpush1.msra.mxu0 0.0
      %478 = vmatprep.subr.mxu0 0.0
      %479 = vmatpush1.msra.mxu0 0.0
      %480 = vmatprep.subr.mxu0 0.0
      %481 = vmatpush1.msra.mxu0 0.0
      %482 = vmatprep.subr.mxu0 0.0
      %483 = vmatpush1.msra.mxu0 0.0
      %484 = vmatprep.subr.mxu0 0.0
      %485 = vmatpush1.msra.mxu0 0.0
      %486 = vmatprep.subr.mxu0 0.0
      %487 = vmatpush1.msra.mxu0 0.0
      %488 = vmatprep.subr.mxu0 0.0
      %489 = vmatpush1.msra.mxu0 %v456
      %490 = vmatprep.subr.mxu0 0.0
      %491 = vmatpush2.msra.mxu0 0.0
      %492 = vmatprep.subr.mxu0 0.0
      %493 = vmatpush2.msra.mxu0 0.0
      %494 = vmatprep.subr.mxu0 0.0
      %495 = vmatpush2.msra.mxu0 0.0
      %496 = vmatprep.subr.mxu0 0.0
      %497 = vmatpush2.msra.mxu0 0.0
      %498 = vmatprep.subr.mxu0 0.0
      %499 = vmatpush2.msra.mxu0 0.0
      %500 = vmatprep.subr.mxu0 0.0
      %501 = vmatpush2.msra.mxu0 0.0
      %502 = vmatprep.subr.mxu0 0.0
      %503 = vmatpush2.msra.mxu0 0.0
      %504 = vmatprep.subr.mxu0 0.0
      %505 = vmatpush2.msra.mxu0 0.0
      %506 = vmatprep.subr.mxu0 0.0
      %507 = vmatpush2.msra.mxu0 0.0
      %508 = vmatprep.subr.mxu0 0.0
      %509 = vmatpush2.msra.mxu0 0.0
      %510 = vmatprep.subr.mxu0 0.0
      %511 = vmatpush2.msra.mxu0 0.0
      %512 = vmatprep.subr.mxu0 0.0
      %513 = vmatpush2.msra.mxu0 0.0
      %514 = vmatprep.subr.mxu0 0.0
      %515 = vmatpush2.msra.mxu0 0.0
      %516 = vmatprep.subr.mxu0 0.0
      %517 = vmatpush2.msra.mxu0 0.0
      %518 = vmatprep.subr.mxu0 0.0
      %519 = vmatpush2.msra.mxu0 0.0
      %520 = vmatprep.subr.mxu0 0.0
      %521 = vmatpush2.msra.mxu0 0.0
      %522 = vmatprep.mubr.f32.mxu0 0.0
      %523 = vmatmul.mubr.f32.gmra.mxu0 %v453
      %v524 = vpop.f32.mrf.mxu0
      %v525 = vadd.f32 %v450, %v524
      %v526 = vpop.f32.mrf.mxu0
      %527 = vdwg.mxu0
      %v528 = vmax.f32 %v525, 0.0
      %v529 = vld [vmem:[%s5] sm:$0xff]
      %vm530 = vcmask 64512
      %v532 = vsel %vm530, %v529, 0
      %534 = vmatprep.subr.mxu0 0.0
      %535 = vmatpush1.msra.mxu0 0.0
      %536 = vmatprep.subr.mxu0 0.0
      %537 = vmatpush1.msra.mxu0 0.0
      %538 = vmatprep.subr.mxu0 0.0
      %539 = vmatpush1.msra.mxu0 0.0
      %540 = vmatprep.subr.mxu0 0.0
      %541 = vmatpush1.msra.mxu0 0.0
      %542 = vmatprep.subr.mxu0 0.0
      %543 = vmatpush1.msra.mxu0 0.0
      %544 = vmatprep.subr.mxu0 0.0
      %545 = vmatpush1.msra.mxu0 0.0
      %546 = vmatprep.subr.mxu0 0.0
      %547 = vmatpush1.msra.mxu0 0.0
      %548 = vmatprep.subr.mxu0 0.0
      %549 = vmatpush1.msra.mxu0 0.0
      %550 = vmatprep.subr.mxu0 0.0
      %551 = vmatpush1.msra.mxu0 0.0
      %552 = vmatprep.subr.mxu0 0.0
      %553 = vmatpush1.msra.mxu0 0.0
      %554 = vmatprep.subr.mxu0 0.0
      %555 = vmatpush1.msra.mxu0 0.0
      %556 = vmatprep.subr.mxu0 0.0
      %557 = vmatpush1.msra.mxu0 0.0
      %558 = vmatprep.subr.mxu0 0.0
      %559 = vmatpush1.msra.mxu0 0.0
      %560 = vmatprep.subr.mxu0 0.0
      %561 = vmatpush1.msra.mxu0 0.0
      %562 = vmatprep.subr.mxu0 0.0
      %563 = vmatpush1.msra.mxu0 0.0
      %564 = vmatprep.subr.mxu0 0.0
      %565 = vmatpush1.msra.mxu0 %v528
      %566 = vmatprep.subr.mxu0 0.0
      %567 = vmatpush2.msra.mxu0 0.0
      %568 = vmatprep.subr.mxu0 0.0
      %569 = vmatpush2.msra.mxu0 0.0
      %570 = vmatprep.subr.mxu0 0.0
      %571 = vmatpush2.msra.mxu0 0.0
      %572 = vmatprep.subr.mxu0 0.0
      %573 = vmatpush2.msra.mxu0 0.0
      %574 = vmatprep.subr.mxu0 0.0
      %575 = vmatpush2.msra.mxu0 0.0
      %576 = vmatprep.subr.mxu0 0.0
      %577 = vmatpush2.msra.mxu0 0.0
      %578 = vmatprep.subr.mxu0 0.0
      %579 = vmatpush2.msra.mxu0 0.0
      %580 = vmatprep.subr.mxu0 0.0
      %581 = vmatpush2.msra.mxu0 0.0
      %582 = vmatprep.subr.mxu0 0.0
      %583 = vmatpush2.msra.mxu0 0.0
      %584 = vmatprep.subr.mxu0 0.0
      %585 = vmatpush2.msra.mxu0 0.0
      %586 = vmatprep.subr.mxu0 0.0
      %587 = vmatpush2.msra.mxu0 0.0
      %588 = vmatprep.subr.mxu0 0.0
      %589 = vmatpush2.msra.mxu0 0.0
      %590 = vmatprep.subr.mxu0 0.0
      %591 = vmatpush2.msra.mxu0 0.0
      %592 = vmatprep.subr.mxu0 0.0
      %593 = vmatpush2.msra.mxu0 0.0
      %594 = vmatprep.subr.mxu0 0.0
      %595 = vmatpush2.msra.mxu0 0.0
      %596 = vmatprep.subr.mxu0 0.0
      %597 = vmatpush2.msra.mxu0 0.0
      %598 = vmatprep.mubr.f32.mxu0 0.0
      %599 = vmatmul.mubr.f32.gmra.mxu0 %v532
      %v600 = vpop.f32.mrf.mxu0
      %v601 = vadd.f32 0.0, %v600
      %v602 = vpop.f32.mrf.mxu0
      %603 = vdwg.mxu0
      %605 = vset.pattern.permute.xlu0 0
      %606 = vperm.xlu0 %605, %v601
      %v607 = vpop.permute.xlu0 %606
      %vm609 = vcmask 261120
      %v611 = vsel %vm609, %v434, 0
      %613 = vmatprep.subr.bf16.mxu0 0
      %614 = vmatpush1.bf16.msra.mxu0 0
      %615 = vmatprep.subr.bf16.mxu0 0
      %616 = vmatpush1.bf16.msra.mxu0 0
      %617 = vmatprep.subr.bf16.mxu0 0
      %618 = vmatpush1.bf16.msra.mxu0 0
      %619 = vmatprep.subr.bf16.mxu0 0
      %620 = vmatpush1.bf16.msra.mxu0 0
      %621 = vmatprep.subr.bf16.mxu0 0
      %622 = vmatpush1.bf16.msra.mxu0 0
      %623 = vmatprep.subr.bf16.mxu0 0
      %624 = vmatpush1.bf16.msra.mxu0 0
      %625 = vmatprep.subr.bf16.mxu0 %v438
      %626 = vmatpush1.bf16.msra.mxu0 %v437
      %627 = vmatprep.subr.bf16.mxu0 %v436
      %628 = vmatpush1.bf16.msra.mxu0 %v435
      %629 = vmatprep.subr.bf16.mxu0 0
      %630 = vmatpush2.bf16.msra.mxu0 0
      %631 = vmatprep.subr.bf16.mxu0 0
      %632 = vmatpush2.bf16.msra.mxu0 0
      %633 = vmatprep.subr.bf16.mxu0 0
      %634 = vmatpush2.bf16.msra.mxu0 0
      %635 = vmatprep.subr.bf16.mxu0 0
      %636 = vmatpush2.bf16.msra.mxu0 0
      %637 = vmatprep.subr.bf16.mxu0 0
      %638 = vmatpush2.bf16.msra.mxu0 0
      %639 = vmatprep.subr.bf16.mxu0 0
      %640 = vmatpush2.bf16.msra.mxu0 0
      %641 = vmatprep.subr.bf16.mxu0 0
      %642 = vmatpush2.bf16.msra.mxu0 0
      %643 = vmatprep.subr.bf16.mxu0 0
      %644 = vmatpush2.bf16.msra.mxu0 0
      %645 = vmatprep.mubr.bf16.mxu0 0
      %646 = vmatmul.mubr.bf16.gmra.mxu0 %v611
      %v647 = vpop.f32.mrf.mxu0
      %v648 = vadd.f32 %v607, %v647
      %v649 = vpop.f32.mrf.mxu0
      %v650 = vadd.f32 %v607, %v649
      %v651 = vpop.f32.mrf.mxu0
      %v652 = vpop.f32.mrf.mxu0
      %653 = vdwg.mxu0
      %654 = vst [vmem:[%s251] sm:$0xff] %v648
      %655 = vst [vmem:[%s251 + $0x8] sm:$0xff] %v650
      %p656 = scmp.lt.s32.totalorder %s17, 1
      %s657 = scalar_select %p656, %s17, 1
      %s658 = smul.addr %s657, 2
      %s659 = smul.addr %s658, 8
      %s660 = scalar_lea.vmem %s6, %s659
      // Predicated region
      $region45: #{_aspp_forward_impl.1} parent=43 // pred_check
        %p661 = pneg %p166
      $region46: #{_aspp_forward_impl.1} parent=43 // pred_check_branch
        %663 = sbr.rel (%p661) target = $region48
      $region47: #{_aspp_forward_impl.1} parent=43 // pred_region
        _
      $region48: #{_aspp_forward_impl.1} parent=43 // pred_fallthru
        _
    $region44: #{_aspp_forward_impl.1} parent=5 // pred_fallthru
      _
    %p664 = scmp.le.s32.totalorder 2, %s12
    // Predicated region
    $region49: #{_aspp_forward_impl.1} parent=5 // pred_check
      %p665 = pneg %p664
    $region50: #{_aspp_forward_impl.1} parent=5 // pred_check_branch
      %667 = sbr.rel (%p665) target = $region52
    $region51: #{_aspp_forward_impl.1} parent=5 // pred_region
      %s668 = ssub.s32 %s12, 2
      // Predicated region
      $region53: #{_aspp_forward_impl.1} parent=51 // pred_check
        %p669 = pneg %p172
      $region54: #{_aspp_forward_impl.1} parent=51 // pred_check_branch
        %671 = sbr.rel (%p669) target = $region56
      $region55: #{_aspp_forward_impl.1} parent=51 // pred_region
        %p672 = scmp.lt.s32.totalorder %s18, 1
        %s673 = scalar_select %p672, %s18, 1
        %s674 = smul.addr %s673, 2
        %s675 = smul.addr %s674, 8
        %s676 = scalar_lea.vmem %s6, %s675
      $region56: #{_aspp_forward_impl.1} parent=51 // pred_fallthru
        _
    $region52: #{_aspp_forward_impl.1} parent=5 // pred_fallthru
      _
  $region6: #{_aspp_forward_impl.1} parent=0 // loop_footer
    %s16 = sadd.s32 1, %s12
  $region7: #{_aspp_forward_impl.1} parent=0 // loop_footer_branch
    %11 = sbr.rel target = $region3
  $region8: #{_aspp_forward_impl.1} parent=0 // loop_exit
    _

</llo_original>
